<compile_context>
chip_gen: v7x
topology: tpu7x:2x2x1
jax: 0.10.0
libtpu: 0.0.40
codegen_flags: <defaults>
</compile_context>

<pallas_src>
import math
import functools

import jax
import jax.numpy as jnp
from jax import lax
from jax.experimental import pallas as pl
from jax.experimental.pallas import tpu as pltpu


def _flash_attn_kernel(q_ref, k_ref, v_ref, o_ref, q_scr, m_scr, l_scr, acc_scr, *, scale):
    """q_ref/o_ref: (1, tq, hg*d); k_ref/v_ref: (1, tk, hg*d).

    Scratch (persist across the kv grid axis):
      q_scr  : (hg, tq, d)  scaled q, native dtype
      m_scr  : (hg, tq, 1)  f32 running max
      l_scr  : (hg, tq, 1)  f32 running denominator
      acc_scr: (hg, tq, d)  f32 output accumulator
    """
    hg, tq, d = q_scr.shape
    kv = pl.program_id(3)
    last_kv = pl.num_programs(3) - 1

    @pl.when(kv == 0)
    def _init():
        m_scr[...] = jnp.full(m_scr.shape, -jnp.inf, dtype=m_scr.dtype)
        l_scr[...] = jnp.zeros_like(l_scr)
        acc_scr[...] = jnp.zeros_like(acc_scr)
        # Hoist q*scale out of the kv loop (the q block is constant across kv).
        for h in range(hg):
            q_scr[h] = q_ref[0, :, h * d:(h + 1) * d] * scale

    # Online softmax update for this kv tile, one head at a time (static unroll;
    # each head is a plain 2-D MXU matmul on a contiguous lane-slice).
    for h in range(hg):
        k_h = k_ref[0, :, h * d:(h + 1) * d]                      # (tk, d)
        v_h = v_ref[0, :, h * d:(h + 1) * d]                      # (tk, d)

        # scores: (tq, tk), contracting d (no materialized transpose).
        s = lax.dot_general(q_scr[h], k_h, (((1,), (1,)), ((), ())),
                            preferred_element_type=jnp.float32)

        m_prev = m_scr[h]                                          # (tq, 1)
        m_new = jnp.maximum(m_prev, jnp.max(s, axis=-1, keepdims=True))
        alpha = jnp.exp(m_prev - m_new)                            # rescale old stats
        p = jnp.exp(s - m_new)                                     # (tq, tk) f32

        # TODO(synk): fold this lane reduction into the PV matmul (ones column) to
        #             move it from the XLU onto the MXU when d < 128.
        l_scr[h] = alpha * l_scr[h] + jnp.sum(p, axis=-1, keepdims=True)
        acc_scr[h] = alpha * acc_scr[h] + lax.dot_general(
            p.astype(v_h.dtype), v_h, (((1,), (0,)), ((), ())),
            preferred_element_type=jnp.float32)
        m_scr[h] = m_new

    @pl.when(kv == last_kv)
    def _finalize():
        exact = o_ref.dtype == jnp.float32   # exact divide for f32 outputs
        for h in range(hg):
            l_h = l_scr[h]
            inv = (1.0 / l_h) if exact else pl.reciprocal(l_h, approx=True)
            o_ref[0, :, h * d:(h + 1) * d] = (acc_scr[h] * inv).astype(o_ref.dtype)


def _vmem_budget_bytes():
    """Half of physical VMEM (capped), so the config adapts v5e/v6e (128 MiB) vs v7x (64 MiB)."""
    phys = 64 * 1024 * 1024
    try:
        info = pltpu.get_tpu_info()
        phys = int(getattr(info, "vmem_capacity_bytes", phys))
    except Exception:
        pass
    return max(16 * 1024 * 1024, min(phys // 2, 64 * 1024 * 1024))


def _vmem_estimate(tq, tk, hg, d, in_isz, out_isz):
    blk = 2 * (tq * hg * d * in_isz          # q tile (double-buffered)
               + 2 * tk * hg * d * in_isz    # k, v tiles
               + tq * hg * d * out_isz)      # o tile
    scr = (tq * hg * d * in_isz              # scaled-q scratch
           + hg * tq * d * 4                 # f32 accumulator
           + 2 * hg * tq * 128 * 4)          # m/l scratch (lane-padded to 128)
    tmps = 2 * hg * tq * tk * 4              # f32 score/prob temporaries (conservative)
    return blk + scr + tmps


def _choose_tiles(L, S, H, d, in_isz, out_isz, budget):
    sub = max(8, 32 // in_isz)               # dtype-aware sublane granularity (8/16/32)

    def tile_cands(n, cap):
        cands = []
        for t in (cap, 256, 128, 64, 32, 16, 8):
            if t <= cap and t <= n and n % t == 0 and t % sub == 0 and t not in cands:
                cands.append(t)
        return cands or [n]                  # full extent is always a legal block dim

    tq_cands = tile_cands(L, 256)
    tk_cands = tile_cands(S, 512)
    # head groups: full H always legal; smaller groups must keep hg*d lane-dense (128-aligned)
    hg_cands = [H] + [g for g in range(H - 1, 0, -1) if H % g == 0 and (g * d) % 128 == 0]

    for tq in tq_cands:                      # prefer big q tiles (K/V HBM traffic ∝ 1/tq)
        for tk in tk_cands:                  # then big kv tiles (per-step overhead)
            for hg in hg_cands:              # shrink head group first to fit VMEM
                if _vmem_estimate(tq, tk, hg, d, in_isz, out_isz) <= budget:
                    return tq, tk, hg
    return tq_cands[-1], tk_cands[-1], hg_cands[-1]


def attention_pallas(queries, keys, values, scale=None):
    """queries: (N, L, H, d); keys/values: (N, S, H, d). Returns (N, L, H, d)."""
    N, L, H, C = queries.shape
    S = keys.shape[1]
    if scale is None:
        scale = 1.0 / math.sqrt(C)
    out_dtype = queries.dtype

    # Lane-dense, transpose-free layout: collapsing the trailing (H, d) dims of a
    # contiguous row-major array is metadata-only (no HBM traffic).
    q = queries.reshape(N, L, H * C)
    k = keys.reshape(N, S, H * C)
    v = values.reshape(N, S, H * C)

    in_isz = jnp.dtype(q.dtype).itemsize
    out_isz = jnp.dtype(out_dtype).itemsize
    budget = _vmem_budget_bytes()
    tq, tk, hg = _choose_tiles(L, S, H, C, in_isz, out_isz, budget)

    grid = (N, H // hg, L // tq, S // tk)
    hd = hg * C

    out = pl.pallas_call(
        functools.partial(_flash_attn_kernel, scale=float(scale)),
        out_shape=jax.ShapeDtypeStruct((N, L, H * C), out_dtype),
        grid_spec=pltpu.PrefetchScalarGridSpec(
            num_scalar_prefetch=0,
            grid=grid,
            in_specs=[
                pl.BlockSpec((1, tq, hd), lambda n, h, qi, ki: (n, qi, h)),
                pl.BlockSpec((1, tk, hd), lambda n, h, qi, ki: (n, ki, h)),
                pl.BlockSpec((1, tk, hd), lambda n, h, qi, ki: (n, ki, h)),
            ],
            # output block constant across the kv axis -> resident accumulator
            out_specs=pl.BlockSpec((1, tq, hd), lambda n, h, qi, ki: (n, qi, h)),
            scratch_shapes=[
                pltpu.VMEM((hg, tq, C), q.dtype),       # scaled q
                pltpu.VMEM((hg, tq, 1), jnp.float32),   # running max
                pltpu.VMEM((hg, tq, 1), jnp.float32),   # running denominator
                pltpu.VMEM((hg, tq, C), jnp.float32),   # output accumulator
            ],
        ),
        compiler_params=pltpu.CompilerParams(
            dimension_semantics=("parallel", "parallel", "parallel", "arbitrary"),
            vmem_limit_bytes=int(budget),
        ),
    )(q, k, v)

    return out.reshape(N, L, H, C)


def attention_ref(queries, keys, values, scale=None):
    C = queries.shape[-1]
    if scale is None:
        scale = 1.0 / math.sqrt(C)
    scores = jnp.einsum('nlhd,nshd->nhls', queries, keys)
    weights = jax.nn.softmax(scale * scores, axis=-1)
    return jnp.einsum('nhls,nshd->nlhd', weights, values)


if __name__ == "__main__":
    # small shapes consistent with the module's forward: N x L x Head x d
    N, L, S, H, D = 2, 8, 8, 2, 32
    key = jax.random.PRNGKey(0)
    kq, kk, kv = jax.random.split(key, 3)
    queries = jax.random.normal(kq, (N, L, H, D), dtype=jnp.float32)
    keys = jax.random.normal(kk, (N, S, H, D), dtype=jnp.float32)
    values = jax.random.normal(kv, (N, S, H, D), dtype=jnp.float32)

    out = jax.block_until_ready(attention_pallas(queries, keys, values))
    ref = attention_ref(queries, keys, values)

    assert out.shape == (N, L, H, D)
    assert jnp.allclose(out, ref, atol=1e-3, rtol=1e-3), "mismatch vs reference"
    print("KERNEL_OK")
</pallas_src>

<mosaic_0001>
module attributes {stable_mosaic.version = 11 : i64} {
  func.func @_flash_attn_kernel(%arg0: i32, %arg1: i32, %arg2: i32, %arg3: i32, %arg4: memref<1x8x64xf32, #tpu.memory_space<vmem>>, %arg5: memref<1x8x64xf32, #tpu.memory_space<vmem>>, %arg6: memref<1x8x64xf32, #tpu.memory_space<vmem>>, %arg7: memref<1x8x64xf32, #tpu.memory_space<vmem>>, %arg8: memref<2x8x32xf32, #tpu.memory_space<vmem>>, %arg9: memref<2x8x1xf32, #tpu.memory_space<vmem>>, %arg10: memref<2x8x1xf32, #tpu.memory_space<vmem>>, %arg11: memref<2x8x32xf32, #tpu.memory_space<vmem>>) attributes {dimension_semantics = [#tpu.dimension_semantics<parallel>, #tpu.dimension_semantics<parallel>, #tpu.dimension_semantics<parallel>, #tpu.dimension_semantics<arbitrary>], iteration_bounds = array<i64: 2, 1, 1, 1>, scalar_prefetch = 0 : i64, scratch_operands = 4 : i64, tpu.core_type = #tpu.core_type<tc>, window_params = [{transform_indices = @transform_0, window_bounds = array<i64: 1, 8, 64>}, {transform_indices = @transform_1, window_bounds = array<i64: 1, 8, 64>}, {transform_indices = @transform_2, window_bounds = array<i64: 1, 8, 64>}, {transform_indices = @transform_3, window_bounds = array<i64: 1, 8, 64>}]} {
    %c0_i32 = arith.constant 0 : i32
    %0 = arith.cmpi eq, %arg3, %c0_i32 : i32
    %1 = arith.extui %0 : i1 to i32
    %c0_i32_0 = arith.constant 0 : i32
    %2 = arith.cmpi ne, %1, %c0_i32_0 : i32
    scf.if %2 {
      %cst_61 = arith.constant 0xFF800000 : f32
      %82 = vector.broadcast %cst_61 : f32 to vector<2x8x1xf32>
      %c0_62 = arith.constant 0 : index
      %c0_63 = arith.constant 0 : index
      %c0_64 = arith.constant 0 : index
      %83 = vector.load %arg9[%c0_62, %c0_63, %c0_64] : memref<2x8x1xf32, #tpu.memory_space<vmem>>, vector<2x8x1xf32>
      tpu.vector_store %arg9[%c0_62, %c0_63, %c0_64], %82 {strides = array<i32>} : memref<2x8x1xf32, #tpu.memory_space<vmem>>, vector<2x8x1xf32>,
      %cst_65 = arith.constant 0.000000e+00 : f32
      %84 = vector.broadcast %cst_65 : f32 to vector<2x8x1xf32>
      %c0_66 = arith.constant 0 : index
      %c0_67 = arith.constant 0 : index
      %c0_68 = arith.constant 0 : index
      %85 = vector.load %arg10[%c0_66, %c0_67, %c0_68] : memref<2x8x1xf32, #tpu.memory_space<vmem>>, vector<2x8x1xf32>
      tpu.vector_store %arg10[%c0_66, %c0_67, %c0_68], %84 {strides = array<i32>} : memref<2x8x1xf32, #tpu.memory_space<vmem>>, vector<2x8x1xf32>,
      %cst_69 = arith.constant 0.000000e+00 : f32
      %86 = vector.broadcast %cst_69 : f32 to vector<2x8x32xf32>
      %c0_70 = arith.constant 0 : index
      %c0_71 = arith.constant 0 : index
      %c0_72 = arith.constant 0 : index
      %87 = vector.load %arg11[%c0_70, %c0_71, %c0_72] : memref<2x8x32xf32, #tpu.memory_space<vmem>>, vector<2x8x32xf32>
      tpu.vector_store %arg11[%c0_70, %c0_71, %c0_72], %86 {strides = array<i32>} : memref<2x8x32xf32, #tpu.memory_space<vmem>>, vector<2x8x32xf32>,
      %c0_73 = arith.constant 0 : index
      %c0_74 = arith.constant 0 : index
      %c0_75 = arith.constant 0 : index
      %88 = vector.load %arg4[%c0_73, %c0_74, %c0_75] : memref<1x8x64xf32, #tpu.memory_space<vmem>>, vector<1x8x32xf32>
      %89 = vector.shape_cast %88 : vector<1x8x32xf32> to vector<8x32xf32>
      %cst_76 = arith.constant 0.176776692 : f32
      %90 = vector.broadcast %cst_76 : f32 to vector<8x32xf32>
      %91 = arith.mulf %89, %90 : vector<8x32xf32>
      %c0_77 = arith.constant 0 : index
      %c0_78 = arith.constant 0 : index
      %c0_79 = arith.constant 0 : index
      %92 = vector.load %arg8[%c0_77, %c0_78, %c0_79] : memref<2x8x32xf32, #tpu.memory_space<vmem>>, vector<1x8x32xf32>
      %93 = vector.shape_cast %92 : vector<1x8x32xf32> to vector<8x32xf32>
      %94 = vector.shape_cast %91 : vector<8x32xf32> to vector<1x8x32xf32>
      tpu.vector_store %arg8[%c0_77, %c0_78, %c0_79], %94 {strides = array<i32>} : memref<2x8x32xf32, #tpu.memory_space<vmem>>, vector<1x8x32xf32>,
      %c0_80 = arith.constant 0 : index
      %c0_81 = arith.constant 0 : index
      %c32_82 = arith.constant 32 : index
      %95 = vector.load %arg4[%c0_80, %c0_81, %c32_82] : memref<1x8x64xf32, #tpu.memory_space<vmem>>, vector<1x8x32xf32>
      %96 = vector.shape_cast %95 : vector<1x8x32xf32> to vector<8x32xf32>
      %cst_83 = arith.constant 0.176776692 : f32
      %97 = vector.broadcast %cst_83 : f32 to vector<8x32xf32>
      %98 = arith.mulf %96, %97 : vector<8x32xf32>
      %c1_84 = arith.constant 1 : index
      %c0_85 = arith.constant 0 : index
      %c0_86 = arith.constant 0 : index
      %99 = vector.load %arg8[%c1_84, %c0_85, %c0_86] : memref<2x8x32xf32, #tpu.memory_space<vmem>>, vector<1x8x32xf32>
      %100 = vector.shape_cast %99 : vector<1x8x32xf32> to vector<8x32xf32>
      %101 = vector.shape_cast %98 : vector<8x32xf32> to vector<1x8x32xf32>
      tpu.vector_store %arg8[%c1_84, %c0_85, %c0_86], %101 {strides = array<i32>} : memref<2x8x32xf32, #tpu.memory_space<vmem>>, vector<1x8x32xf32>,
    } else {
    }
    %c0 = arith.constant 0 : index
    %c0_1 = arith.constant 0 : index
    %c0_2 = arith.constant 0 : index
    %3 = vector.load %arg5[%c0, %c0_1, %c0_2] : memref<1x8x64xf32, #tpu.memory_space<vmem>>, vector<1x8x32xf32>
    %4 = vector.shape_cast %3 : vector<1x8x32xf32> to vector<8x32xf32>
    %c0_3 = arith.constant 0 : index
    %c0_4 = arith.constant 0 : index
    %c0_5 = arith.constant 0 : index
    %5 = vector.load %arg6[%c0_3, %c0_4, %c0_5] : memref<1x8x64xf32, #tpu.memory_space<vmem>>, vector<1x8x32xf32>
    %6 = vector.shape_cast %5 : vector<1x8x32xf32> to vector<8x32xf32>
    %c0_6 = arith.constant 0 : index
    %c0_7 = arith.constant 0 : index
    %c0_8 = arith.constant 0 : index
    %7 = vector.load %arg8[%c0_6, %c0_7, %c0_8] : memref<2x8x32xf32, #tpu.memory_space<vmem>>, vector<1x8x32xf32>
    %8 = vector.shape_cast %7 : vector<1x8x32xf32> to vector<8x32xf32>
    %cst = arith.constant dense<0.000000e+00> : vector<8x8xf32>
    %9 = tpu.matmul %8, %4, %cst {dimension_numbers = #tpu.dot_dimension_numbers<[1], [1], [0], [0], [0, 0, 1, 0], [], []>} : vector<8x32xf32>, vector<8x32xf32>, vector<8x8xf32> -> vector<8x8xf32>
    %c0_9 = arith.constant 0 : index
    %c0_10 = arith.constant 0 : index
    %c0_11 = arith.constant 0 : index
    %10 = vector.load %arg9[%c0_9, %c0_10, %c0_11] : memref<2x8x1xf32, #tpu.memory_space<vmem>>, vector<1x8x1xf32>
    %11 = vector.shape_cast %10 : vector<1x8x1xf32> to vector<8x1xf32>
    %cst_12 = arith.constant dense<0xFF800000> : vector<8xf32>
    %12 = vector.multi_reduction <maximumf>, %9, %cst_12 [1] : vector<8x8xf32> to vector<8xf32>
    %13 = vector.shape_cast %12 : vector<8xf32> to vector<8x1xf32>
    %14 = arith.maximumf %11, %13 : vector<8x1xf32>
    %15 = arith.subf %11, %14 : vector<8x1xf32>
    %16 = math.exp %15 : vector<8x1xf32>
    %17 = vector.broadcast %14 : vector<8x1xf32> to vector<8x8xf32>
    %18 = arith.subf %9, %17 : vector<8x8xf32>
    %19 = math.exp %18 : vector<8x8xf32>
    %c0_13 = arith.constant 0 : index
    %c0_14 = arith.constant 0 : index
    %c0_15 = arith.constant 0 : index
    %20 = vector.load %arg10[%c0_13, %c0_14, %c0_15] : memref<2x8x1xf32, #tpu.memory_space<vmem>>, vector<1x8x1xf32>
    %21 = vector.shape_cast %20 : vector<1x8x1xf32> to vector<8x1xf32>
    %22 = arith.mulf %16, %21 : vector<8x1xf32>
    %cst_16 = arith.constant dense<0.000000e+00> : vector<8xf32>
    %23 = vector.multi_reduction <add>, %19, %cst_16 [1] : vector<8x8xf32> to vector<8xf32>
    %24 = vector.shape_cast %23 : vector<8xf32> to vector<8x1xf32>
    %25 = arith.addf %22, %24 : vector<8x1xf32>
    %c0_17 = arith.constant 0 : index
    %c0_18 = arith.constant 0 : index
    %c0_19 = arith.constant 0 : index
    %26 = vector.load %arg10[%c0_17, %c0_18, %c0_19] : memref<2x8x1xf32, #tpu.memory_space<vmem>>, vector<1x8x1xf32>
    %27 = vector.shape_cast %26 : vector<1x8x1xf32> to vector<8x1xf32>
    %28 = vector.shape_cast %25 : vector<8x1xf32> to vector<1x8x1xf32>
    tpu.vector_store %arg10[%c0_17, %c0_18, %c0_19], %28 {strides = array<i32>} : memref<2x8x1xf32, #tpu.memory_space<vmem>>, vector<1x8x1xf32>,
    %c0_20 = arith.constant 0 : index
    %c0_21 = arith.constant 0 : index
    %c0_22 = arith.constant 0 : index
    %29 = vector.load %arg11[%c0_20, %c0_21, %c0_22] : memref<2x8x32xf32, #tpu.memory_space<vmem>>, vector<1x8x32xf32>
    %30 = vector.shape_cast %29 : vector<1x8x32xf32> to vector<8x32xf32>
    %31 = vector.broadcast %16 : vector<8x1xf32> to vector<8x32xf32>
    %32 = arith.mulf %31, %30 : vector<8x32xf32>
    %cst_23 = arith.constant dense<0.000000e+00> : vector<8x32xf32>
    %33 = tpu.matmul %19, %6, %cst_23 {dimension_numbers = #tpu.dot_dimension_numbers<[1], [0], [0], [1], [0, 0, 1, 1], [], []>} : vector<8x8xf32>, vector<8x32xf32>, vector<8x32xf32> -> vector<8x32xf32>
    %34 = arith.addf %32, %33 : vector<8x32xf32>
    %c0_24 = arith.constant 0 : index
    %c0_25 = arith.constant 0 : index
    %c0_26 = arith.constant 0 : index
    %35 = vector.load %arg11[%c0_24, %c0_25, %c0_26] : memref<2x8x32xf32, #tpu.memory_space<vmem>>, vector<1x8x32xf32>
    %36 = vector.shape_cast %35 : vector<1x8x32xf32> to vector<8x32xf32>
    %37 = vector.shape_cast %34 : vector<8x32xf32> to vector<1x8x32xf32>
    tpu.vector_store %arg11[%c0_24, %c0_25, %c0_26], %37 {strides = array<i32>} : memref<2x8x32xf32, #tpu.memory_space<vmem>>, vector<1x8x32xf32>,
    %c0_27 = arith.constant 0 : index
    %c0_28 = arith.constant 0 : index
    %c0_29 = arith.constant 0 : index
    %38 = vector.load %arg9[%c0_27, %c0_28, %c0_29] : memref<2x8x1xf32, #tpu.memory_space<vmem>>, vector<1x8x1xf32>
    %39 = vector.shape_cast %38 : vector<1x8x1xf32> to vector<8x1xf32>
    %40 = vector.shape_cast %14 : vector<8x1xf32> to vector<1x8x1xf32>
    tpu.vector_store %arg9[%c0_27, %c0_28, %c0_29], %40 {strides = array<i32>} : memref<2x8x1xf32, #tpu.memory_space<vmem>>, vector<1x8x1xf32>,
    %c0_30 = arith.constant 0 : index
    %c0_31 = arith.constant 0 : index
    %c32 = arith.constant 32 : index
    %41 = vector.load %arg5[%c0_30, %c0_31, %c32] : memref<1x8x64xf32, #tpu.memory_space<vmem>>, vector<1x8x32xf32>
    %42 = vector.shape_cast %41 : vector<1x8x32xf32> to vector<8x32xf32>
    %c0_32 = arith.constant 0 : index
    %c0_33 = arith.constant 0 : index
    %c32_34 = arith.constant 32 : index
    %43 = vector.load %arg6[%c0_32, %c0_33, %c32_34] : memref<1x8x64xf32, #tpu.memory_space<vmem>>, vector<1x8x32xf32>
    %44 = vector.shape_cast %43 : vector<1x8x32xf32> to vector<8x32xf32>
    %c1 = arith.constant 1 : index
    %c0_35 = arith.constant 0 : index
    %c0_36 = arith.constant 0 : index
    %45 = vector.load %arg8[%c1, %c0_35, %c0_36] : memref<2x8x32xf32, #tpu.memory_space<vmem>>, vector<1x8x32xf32>
    %46 = vector.shape_cast %45 : vector<1x8x32xf32> to vector<8x32xf32>
    %cst_37 = arith.constant dense<0.000000e+00> : vector<8x8xf32>
    %47 = tpu.matmul %46, %42, %cst_37 {dimension_numbers = #tpu.dot_dimension_numbers<[1], [1], [0], [0], [0, 0, 1, 0], [], []>} : vector<8x32xf32>, vector<8x32xf32>, vector<8x8xf32> -> vector<8x8xf32>
    %c1_38 = arith.constant 1 : index
    %c0_39 = arith.constant 0 : index
    %c0_40 = arith.constant 0 : index
    %48 = vector.load %arg9[%c1_38, %c0_39, %c0_40] : memref<2x8x1xf32, #tpu.memory_space<vmem>>, vector<1x8x1xf32>
    %49 = vector.shape_cast %48 : vector<1x8x1xf32> to vector<8x1xf32>
    %cst_41 = arith.constant dense<0xFF800000> : vector<8xf32>
    %50 = vector.multi_reduction <maximumf>, %47, %cst_41 [1] : vector<8x8xf32> to vector<8xf32>
    %51 = vector.shape_cast %50 : vector<8xf32> to vector<8x1xf32>
    %52 = arith.maximumf %49, %51 : vector<8x1xf32>
    %53 = arith.subf %49, %52 : vector<8x1xf32>
    %54 = math.exp %53 : vector<8x1xf32>
    %55 = vector.broadcast %52 : vector<8x1xf32> to vector<8x8xf32>
    %56 = arith.subf %47, %55 : vector<8x8xf32>
    %57 = math.exp %56 : vector<8x8xf32>
    %c1_42 = arith.constant 1 : index
    %c0_43 = arith.constant 0 : index
    %c0_44 = arith.constant 0 : index
    %58 = vector.load %arg10[%c1_42, %c0_43, %c0_44] : memref<2x8x1xf32, #tpu.memory_space<vmem>>, vector<1x8x1xf32>
    %59 = vector.shape_cast %58 : vector<1x8x1xf32> to vector<8x1xf32>
    %60 = arith.mulf %54, %59 : vector<8x1xf32>
    %cst_45 = arith.constant dense<0.000000e+00> : vector<8xf32>
    %61 = vector.multi_reduction <add>, %57, %cst_45 [1] : vector<8x8xf32> to vector<8xf32>
    %62 = vector.shape_cast %61 : vector<8xf32> to vector<8x1xf32>
    %63 = arith.addf %60, %62 : vector<8x1xf32>
    %c1_46 = arith.constant 1 : index
    %c0_47 = arith.constant 0 : index
    %c0_48 = arith.constant 0 : index
    %64 = vector.load %arg10[%c1_46, %c0_47, %c0_48] : memref<2x8x1xf32, #tpu.memory_space<vmem>>, vector<1x8x1xf32>
    %65 = vector.shape_cast %64 : vector<1x8x1xf32> to vector<8x1xf32>
    %66 = vector.shape_cast %63 : vector<8x1xf32> to vector<1x8x1xf32>
    tpu.vector_store %arg10[%c1_46, %c0_47, %c0_48], %66 {strides = array<i32>} : memref<2x8x1xf32, #tpu.memory_space<vmem>>, vector<1x8x1xf32>,
    %c1_49 = arith.constant 1 : index
    %c0_50 = arith.constant 0 : index
    %c0_51 = arith.constant 0 : index
    %67 = vector.load %arg11[%c1_49, %c0_50, %c0_51] : memref<2x8x32xf32, #tpu.memory_space<vmem>>, vector<1x8x32xf32>
    %68 = vector.shape_cast %67 : vector<1x8x32xf32> to vector<8x32xf32>
    %69 = vector.broadcast %54 : vector<8x1xf32> to vector<8x32xf32>
    %70 = arith.mulf %69, %68 : vector<8x32xf32>
    %cst_52 = arith.constant dense<0.000000e+00> : vector<8x32xf32>
    %71 = tpu.matmul %57, %44, %cst_52 {dimension_numbers = #tpu.dot_dimension_numbers<[1], [0], [0], [1], [0, 0, 1, 1], [], []>} : vector<8x8xf32>, vector<8x32xf32>, vector<8x32xf32> -> vector<8x32xf32>
    %72 = arith.addf %70, %71 : vector<8x32xf32>
    %c1_53 = arith.constant 1 : index
    %c0_54 = arith.constant 0 : index
    %c0_55 = arith.constant 0 : index
    %73 = vector.load %arg11[%c1_53, %c0_54, %c0_55] : memref<2x8x32xf32, #tpu.memory_space<vmem>>, vector<1x8x32xf32>
    %74 = vector.shape_cast %73 : vector<1x8x32xf32> to vector<8x32xf32>
    %75 = vector.shape_cast %72 : vector<8x32xf32> to vector<1x8x32xf32>
    tpu.vector_store %arg11[%c1_53, %c0_54, %c0_55], %75 {strides = array<i32>} : memref<2x8x32xf32, #tpu.memory_space<vmem>>, vector<1x8x32xf32>,
    %c1_56 = arith.constant 1 : index
    %c0_57 = arith.constant 0 : index
    %c0_58 = arith.constant 0 : index
    %76 = vector.load %arg9[%c1_56, %c0_57, %c0_58] : memref<2x8x1xf32, #tpu.memory_space<vmem>>, vector<1x8x1xf32>
    %77 = vector.shape_cast %76 : vector<1x8x1xf32> to vector<8x1xf32>
    %78 = vector.shape_cast %52 : vector<8x1xf32> to vector<1x8x1xf32>
    tpu.vector_store %arg9[%c1_56, %c0_57, %c0_58], %78 {strides = array<i32>} : memref<2x8x1xf32, #tpu.memory_space<vmem>>, vector<1x8x1xf32>,
    %c0_i32_59 = arith.constant 0 : i32
    %79 = arith.cmpi eq, %arg3, %c0_i32_59 : i32
    %80 = arith.extui %79 : i1 to i32
    %c0_i32_60 = arith.constant 0 : i32
    %81 = arith.cmpi ne, %80, %c0_i32_60 : i32
    scf.if %81 {
      %c0_61 = arith.constant 0 : index
      %c0_62 = arith.constant 0 : index
      %c0_63 = arith.constant 0 : index
      %82 = vector.load %arg10[%c0_61, %c0_62, %c0_63] : memref<2x8x1xf32, #tpu.memory_space<vmem>>, vector<1x8x1xf32>
      %83 = vector.shape_cast %82 : vector<1x8x1xf32> to vector<8x1xf32>
      %cst_64 = arith.constant 1.000000e+00 : f32
      %84 = vector.broadcast %cst_64 : f32 to vector<8x1xf32>
      %85 = arith.divf %84, %83 : vector<8x1xf32>
      %c0_65 = arith.constant 0 : index
      %c0_66 = arith.constant 0 : index
      %c0_67 = arith.constant 0 : index
      %86 = vector.load %arg11[%c0_65, %c0_66, %c0_67] : memref<2x8x32xf32, #tpu.memory_space<vmem>>, vector<1x8x32xf32>
      %87 = vector.shape_cast %86 : vector<1x8x32xf32> to vector<8x32xf32>
      %88 = vector.broadcast %85 : vector<8x1xf32> to vector<8x32xf32>
      %89 = arith.mulf %87, %88 : vector<8x32xf32>
      %c0_68 = arith.constant 0 : index
      %c0_69 = arith.constant 0 : index
      %c0_70 = arith.constant 0 : index
      %90 = vector.load %arg7[%c0_68, %c0_69, %c0_70] : memref<1x8x64xf32, #tpu.memory_space<vmem>>, vector<1x8x32xf32>
      %91 = vector.shape_cast %90 : vector<1x8x32xf32> to vector<8x32xf32>
      %92 = vector.shape_cast %89 : vector<8x32xf32> to vector<1x8x32xf32>
      tpu.vector_store %arg7[%c0_68, %c0_69, %c0_70], %92 {strides = array<i32>} : memref<1x8x64xf32, #tpu.memory_space<vmem>>, vector<1x8x32xf32>,
      %c1_71 = arith.constant 1 : index
      %c0_72 = arith.constant 0 : index
      %c0_73 = arith.constant 0 : index
      %93 = vector.load %arg10[%c1_71, %c0_72, %c0_73] : memref<2x8x1xf32, #tpu.memory_space<vmem>>, vector<1x8x1xf32>
      %94 = vector.shape_cast %93 : vector<1x8x1xf32> to vector<8x1xf32>
      %cst_74 = arith.constant 1.000000e+00 : f32
      %95 = vector.broadcast %cst_74 : f32 to vector<8x1xf32>
      %96 = arith.divf %95, %94 : vector<8x1xf32>
      %c1_75 = arith.constant 1 : index
      %c0_76 = arith.constant 0 : index
      %c0_77 = arith.constant 0 : index
      %97 = vector.load %arg11[%c1_75, %c0_76, %c0_77] : memref<2x8x32xf32, #tpu.memory_space<vmem>>, vector<1x8x32xf32>
      %98 = vector.shape_cast %97 : vector<1x8x32xf32> to vector<8x32xf32>
      %99 = vector.broadcast %96 : vector<8x1xf32> to vector<8x32xf32>
      %100 = arith.mulf %98, %99 : vector<8x32xf32>
      %c0_78 = arith.constant 0 : index
      %c0_79 = arith.constant 0 : index
      %c32_80 = arith.constant 32 : index
      %101 = vector.load %arg7[%c0_78, %c0_79, %c32_80] : memref<1x8x64xf32, #tpu.memory_space<vmem>>, vector<1x8x32xf32>
      %102 = vector.shape_cast %101 : vector<1x8x32xf32> to vector<8x32xf32>
      %103 = vector.shape_cast %100 : vector<8x32xf32> to vector<1x8x32xf32>
      tpu.vector_store %arg7[%c0_78, %c0_79, %c32_80], %103 {strides = array<i32>} : memref<1x8x64xf32, #tpu.memory_space<vmem>>, vector<1x8x32xf32>,
    } else {
    }
    return
  }
  func.func @transform_0(%arg0: i32, %arg1: i32, %arg2: i32, %arg3: i32) -> (i32, i32, i32) {
    %c0_i32 = arith.constant 0 : i32
    return %arg0, %arg2, %arg1 : i32, i32, i32
  }
  func.func @transform_1(%arg0: i32, %arg1: i32, %arg2: i32, %arg3: i32) -> (i32, i32, i32) {
    %c0_i32 = arith.constant 0 : i32
    return %arg0, %arg3, %arg1 : i32, i32, i32
  }
  func.func @transform_2(%arg0: i32, %arg1: i32, %arg2: i32, %arg3: i32) -> (i32, i32, i32) {
    %c0_i32 = arith.constant 0 : i32
    return %arg0, %arg3, %arg1 : i32, i32, i32
  }
  func.func @transform_3(%arg0: i32, %arg1: i32, %arg2: i32, %arg3: i32) -> (i32, i32, i32) {
    %c0_i32 = arith.constant 0 : i32
    return %arg0, %arg2, %arg1 : i32, i32, i32
  }
}

</mosaic_0001>

<llo_original>
// kernel: tpu_custom_call.1
$region0: #{tpu_custom_call.1}
  #allocation0 [shape = 'u32[]', space=smem, size = 0x4, offset = 0x4, fixed_abs, tag = 'smem constant byte address 0x4 - core index']
  #allocation1 [shape = 'u32[144,128]{1,0:T(1,128)}', space=vmem, size = 0x12000, scoped, tag = 'internal scratch']
  #allocation2 [shape = 'f32[2,8,32]{2,1,0:T(8,128)}', space=vmem, size = 0x2000, scoped, tag = 'scratch operand']
  #allocation3 [shape = 'f32[2,8,1]{2,1,0:T(8,128)}', space=vmem, size = 0x2000, scoped, tag = 'scratch operand']
  #allocation4 [shape = 'f32[2,8,1]{2,1,0:T(8,128)}', space=vmem, size = 0x2000, scoped, tag = 'scratch operand']
  #allocation5 [shape = 'f32[2,8,32]{2,1,0:T(8,128)}', space=vmem, size = 0x2000, scoped, tag = 'scratch operand']
  %s0 = inlined_call_operand.hbm [shape: f32[2,8,64], index: 0, kind: input, shape index: {}]
  %s1 = inlined_call_operand.hbm [shape: f32[2,8,64], index: 1, kind: input, shape index: {}]
  %s2 = inlined_call_operand.hbm [shape: f32[2,8,64], index: 2, kind: input, shape index: {}]
  %s3 = inlined_call_operand.hbm [shape: f32[2,8,64], index: 3, kind: output, shape index: {}]
  %s4 = sld [smem:[#allocation0]]
  $region65: #{tpu_custom_call.1} parent=0
    _
  %s6 = ssub.s32 1, %s4
  %s7 = scalar_select 0, %s6, %s4
  $region1: #{tpu_custom_call.1} parent=0
    #allocation6 [shape = 'u8[8192]{0}', space=vmem, size = 0x2000, scoped, tag = 'input window, operand 0']
    #allocation7 [shape = 's32[2]{0}', space=sflag, size = 0x8, scoped, tag = 'scoped memory for tpu_custom_call.1']
    #allocation8 [shape = 's32[2]{0}', space=sflag, size = 0x8, scoped, tag = 'scoped memory for tpu_custom_call.1']
    #allocation9 [shape = 'u8[8192]{0}', space=vmem, size = 0x2000, scoped, tag = 'input window, operand 1']
    #allocation10 [shape = 's32[2]{0}', space=sflag, size = 0x8, scoped, tag = 'scoped memory for tpu_custom_call.1']
    #allocation11 [shape = 'u8[8192]{0}', space=vmem, size = 0x2000, scoped, tag = 'input window, operand 2']
    #allocation12 [shape = 'u8[8192]{0}', space=vmem, size = 0x2000, scoped, tag = 'output window, operand 0']
    %8 = vsyncpa [#allocation7], 0
    %s9 = scalar_lea.sflag [#allocation7], 1
    %10 = vsyncpa %s9, 0
    %11 = vsyncpa [#allocation10], 0
    %s12 = scalar_lea.sflag [#allocation10], 1
    %13 = vsyncpa %s12, 0
    %14 = vsyncpa [#allocation8], 0
    %s15 = scalar_lea.sflag [#allocation8], 1
    %16 = vsyncpa %s15, 0
    loop: start=0, step=1, limit=4
    $region2: #{tpu_custom_call.1} parent=1 // loop_pre_header
      _
    $region3: #{tpu_custom_call.1} parent=1 // loop_header
      %s18 = sphi 0, %s22
      %p19 = scmp.ge.s32.totalorder %s18, 4
      %s25 = sphi 0, %s51
      %s26 = sphi 0, %s47
      %s27 = sphi 0, %s43
      %s28 = sphi 0, %s39
      %s29 = sphi 0, %s25
      %s30 = sphi 0, %s26
      %s31 = sphi 0, %s27
      %s32 = sphi 0, %s28
      %s33 = sphi 0, %s29
      %s34 = sphi 0, %s30
      %s35 = sphi 0, %s31
      %s36 = sphi 0, %s32
      %s58 = sphi 0, %s60
      %s61 = sphi 0, %s58
      %s62 = sphi 0, %s61
      %s78 = sphi 0, %s62
      %s88 = sphi 0, %s90
      %s91 = sphi 0, %s88
      %s92 = sphi 0, %s91
      %s108 = sphi 0, %s92
      %s118 = sphi 0, %s120
      %s121 = sphi 0, %s118
      %s122 = sphi 0, %s121
      %s138 = sphi 0, %s122
      %s148 = sphi 0, %s150
      %s151 = sphi 0, %s148
      %s152 = sphi 0, %s151
      %s168 = sphi 0, %s152
    $region4: #{tpu_custom_call.1} parent=1 // loop_header_branch
      %21 = sbr.rel (%p19) target = $region8
    $region5: #{tpu_custom_call.1} parent=1 // loop_body
      %s23 = ssub.s32 %s18, 1
      %s24 = ssub.s32 %s18, 2
      %s37 = sadd.s32 1, %s28
      %p38 = scmp.ge.s32.totalorder %s37, 1
      %s39 = scalar_select %p38, 0, %s37
      %s40 = sadd.s32 1, %s27
      %s41 = scalar_select %p38, %s40, %s27
      %p42 = scmp.ge.s32.totalorder %s41, 1
      %s43 = scalar_select %p42, 0, %s41
      %s44 = sadd.s32 1, %s26
      %s45 = scalar_select %p42, %s44, %s26
      %p46 = scmp.ge.s32.totalorder %s45, 1
      %s47 = scalar_select %p46, 0, %s45
      %s48 = sadd.s32 1, %s25
      %s49 = scalar_select %p46, %s48, %s25
      %p50 = scmp.ge.s32.totalorder %s49, 2
      %s51 = scalar_select %p50, 0, %s49
      %s52 = ssub.s32 %s25, %s51
      %s53 = ssub.s32 %s27, %s43
      %s54 = sor.u32 %s52, %s53
      %s55 = ssub.s32 %s26, %s47
      %s56 = sor.u32 %s54, %s55
      %p57 = scmp.eq.s32.totalorder %s56, 0
      %s59 = sadd.s32 %s58, 1
      %s60 = scalar_select %p57, %s58, %s59
      %p63 = pneg %p57
      %p64 = scmp.eq.s32.totalorder %s18, 1
      %p65 = por %p63, %p64
      %p66 = scmp.ne.s32.totalorder %s58, %s61
      %p67 = scmp.eq.s32.totalorder %s18, 0
      %p68 = por %p66, %p67
      %p69 = scmp.ne.s32.totalorder %s58, %s61
      %p70 = scmp.eq.s32.totalorder %s23, 1
      %p71 = por %p69, %p70
      %p72 = scmp.ne.s32.totalorder %s61, %s62
      %p73 = scmp.eq.s32.totalorder %s23, 0
      %p74 = por %p72, %p73
      %p75 = scmp.ne.s32.totalorder %s61, %s62
      %p76 = scmp.eq.s32.totalorder %s24, 1
      %p77 = por %p75, %p76
      %p79 = scmp.ne.s32.totalorder %s62, %s78
      %p80 = scmp.eq.s32.totalorder %s24, 0
      %p81 = por %p79, %p80
      %s82 = ssub.s32 %s25, %s51
      %s83 = ssub.s32 %s28, %s39
      %s84 = sor.u32 %s82, %s83
      %s85 = ssub.s32 %s26, %s47
      %s86 = sor.u32 %s84, %s85
      %p87 = scmp.eq.s32.totalorder %s86, 0
      %s89 = sadd.s32 %s88, 1
      %s90 = scalar_select %p87, %s88, %s89
      %p93 = pneg %p87
      %p94 = scmp.eq.s32.totalorder %s18, 1
      %p95 = por %p93, %p94
      %p96 = scmp.ne.s32.totalorder %s88, %s91
      %p97 = scmp.eq.s32.totalorder %s18, 0
      %p98 = por %p96, %p97
      %p99 = scmp.ne.s32.totalorder %s88, %s91
      %p100 = scmp.eq.s32.totalorder %s23, 1
      %p101 = por %p99, %p100
      %p102 = scmp.ne.s32.totalorder %s91, %s92
      %p103 = scmp.eq.s32.totalorder %s23, 0
      %p104 = por %p102, %p103
      %p105 = scmp.ne.s32.totalorder %s91, %s92
      %p106 = scmp.eq.s32.totalorder %s24, 1
      %p107 = por %p105, %p106
      %p109 = scmp.ne.s32.totalorder %s92, %s108
      %p110 = scmp.eq.s32.totalorder %s24, 0
      %p111 = por %p109, %p110
      %s112 = ssub.s32 %s25, %s51
      %s113 = ssub.s32 %s28, %s39
      %s114 = sor.u32 %s112, %s113
      %s115 = ssub.s32 %s26, %s47
      %s116 = sor.u32 %s114, %s115
      %p117 = scmp.eq.s32.totalorder %s116, 0
      %s119 = sadd.s32 %s118, 1
      %s120 = scalar_select %p117, %s118, %s119
      %p123 = pneg %p117
      %p124 = scmp.eq.s32.totalorder %s18, 1
      %p125 = por %p123, %p124
      %p126 = scmp.ne.s32.totalorder %s118, %s121
      %p127 = scmp.eq.s32.totalorder %s18, 0
      %p128 = por %p126, %p127
      %p129 = scmp.ne.s32.totalorder %s118, %s121
      %p130 = scmp.eq.s32.totalorder %s23, 1
      %p131 = por %p129, %p130
      %p132 = scmp.ne.s32.totalorder %s121, %s122
      %p133 = scmp.eq.s32.totalorder %s23, 0
      %p134 = por %p132, %p133
      %p135 = scmp.ne.s32.totalorder %s121, %s122
      %p136 = scmp.eq.s32.totalorder %s24, 1
      %p137 = por %p135, %p136
      %p139 = scmp.ne.s32.totalorder %s122, %s138
      %p140 = scmp.eq.s32.totalorder %s24, 0
      %p141 = por %p139, %p140
      %s142 = ssub.s32 %s25, %s51
      %s143 = ssub.s32 %s27, %s43
      %s144 = sor.u32 %s142, %s143
      %s145 = ssub.s32 %s26, %s47
      %s146 = sor.u32 %s144, %s145
      %p147 = scmp.eq.s32.totalorder %s146, 0
      %s149 = sadd.s32 %s148, 1
      %s150 = scalar_select %p147, %s148, %s149
      %p153 = pneg %p147
      %p154 = scmp.eq.s32.totalorder %s18, 1
      %p155 = por %p153, %p154
      %p156 = scmp.ne.s32.totalorder %s148, %s151
      %p157 = scmp.eq.s32.totalorder %s18, 0
      %p158 = por %p156, %p157
      %p159 = scmp.ne.s32.totalorder %s148, %s151
      %p160 = scmp.eq.s32.totalorder %s23, 1
      %p161 = por %p159, %p160
      %p162 = scmp.ne.s32.totalorder %s151, %s152
      %p163 = scmp.eq.s32.totalorder %s23, 0
      %p164 = por %p162, %p163
      %p165 = scmp.ne.s32.totalorder %s151, %s152
      %p166 = scmp.eq.s32.totalorder %s24, 1
      %p167 = por %p165, %p166
      %p169 = scmp.ne.s32.totalorder %s152, %s168
      %p170 = scmp.eq.s32.totalorder %s24, 0
      %p171 = por %p169, %p170
      %p172 = scmp.le.s32.totalorder 1, %s18
      %p173 = scmp.lt.s32.totalorder %s18, 3
      %p174 = pnand %p172, %p173
      %p175 = pneg %p174
      // Predicated region
      $region9: #{tpu_custom_call.1} parent=5 // pred_check
        _
      $region10: #{tpu_custom_call.1} parent=5 // pred_check_branch
        %177 = sbr.rel (%p174) target = $region12
      $region11: #{tpu_custom_call.1} parent=5 // pred_region
        %s178 = ssub.s32 %s18, 1
      $region12: #{tpu_custom_call.1} parent=5 // pred_fallthru
        _
      %p179 = scmp.lt.s32.totalorder %s18, 2
      // Predicated region
      $region13: #{tpu_custom_call.1} parent=5 // pred_check
        %p180 = pneg %p179
      $region14: #{tpu_custom_call.1} parent=5 // pred_check_branch
        %182 = sbr.rel (%p180) target = $region16
      $region15: #{tpu_custom_call.1} parent=5 // pred_region
        // Predicated region
        $region17: #{tpu_custom_call.1} parent=15 // pred_check
          %p183 = pneg %p68
        $region18: #{tpu_custom_call.1} parent=15 // pred_check_branch
          %185 = sbr.rel (%p183) target = $region20
        $region19: #{tpu_custom_call.1} parent=15 // pred_region
          %s186 = sand.u32 %s58, 1
          %s187 = scalar_lea.sflag [#allocation7], %s186
          %s188 = sand.u32 %s58, 1
          %s189 = smul.addr %s188, 8
          %s190 = scalar_lea.vmem [#allocation6], %s189
          %s192 = ssub.s32 128, 128
          %193 = vsyncadd %s187, %s192
          %s194 = sadd.s32 %s26, %s27
          %s195 = sadd.s32 %s194, %s25
          %s196 = smul.addr %s195, 128
          %s197 = scalar_lea.hbm %s0, %s196
          %s199 = sshll.u32 %s190, 4
          %s200 = int_to_ptr.vmem [resolvable:$true] %s199
          %202 = dma.hbm_to_vmem [thread:$0]  %s197, 128, %s200, %s187
        $region20: #{tpu_custom_call.1} parent=15 // pred_fallthru
          _
        // Predicated region
        $region21: #{tpu_custom_call.1} parent=15 // pred_check
          %p203 = pneg %p98
        $region22: #{tpu_custom_call.1} parent=15 // pred_check_branch
          %205 = sbr.rel (%p203) target = $region24
        $region23: #{tpu_custom_call.1} parent=15 // pred_region
          %s206 = sand.u32 %s18, 1
          %s207 = scalar_lea.sflag [#allocation10], %s206
          %s208 = sand.u32 %s88, 1
          %s209 = smul.addr %s208, 8
          %s210 = scalar_lea.vmem [#allocation9], %s209
          %s212 = ssub.s32 128, 128
          %213 = vsyncadd %s207, %s212
          %s214 = sadd.s32 %s26, %s28
          %s215 = sadd.s32 %s214, %s25
          %s216 = smul.addr %s215, 128
          %s217 = scalar_lea.hbm %s1, %s216
          %s219 = sshll.u32 %s210, 4
          %s220 = int_to_ptr.vmem [resolvable:$true] %s219
          %222 = dma.hbm_to_vmem [thread:$0]  %s217, 128, %s220, %s207
        $region24: #{tpu_custom_call.1} parent=15 // pred_fallthru
          _
        // Predicated region
        $region25: #{tpu_custom_call.1} parent=15 // pred_check
          %p223 = pneg %p128
        $region26: #{tpu_custom_call.1} parent=15 // pred_check_branch
          %225 = sbr.rel (%p223) target = $region28
        $region27: #{tpu_custom_call.1} parent=15 // pred_region
          %s226 = sand.u32 %s18, 1
          %s227 = scalar_lea.sflag [#allocation10], %s226
          %s228 = sand.u32 %s118, 1
          %s229 = smul.addr %s228, 8
          %s230 = scalar_lea.vmem [#allocation11], %s229
          %s232 = ssub.s32 128, 128
          %233 = vsyncadd %s227, %s232
          %s234 = sadd.s32 %s26, %s28
          %s235 = sadd.s32 %s234, %s25
          %s236 = smul.addr %s235, 128
          %s237 = scalar_lea.hbm %s2, %s236
          %s239 = sshll.u32 %s230, 4
          %s240 = int_to_ptr.vmem [resolvable:$true] %s239
          %242 = dma.hbm_to_vmem [thread:$0]  %s237, 128, %s240, %s227
        $region28: #{tpu_custom_call.1} parent=15 // pred_fallthru
          _
      $region16: #{tpu_custom_call.1} parent=5 // pred_fallthru
        _
      %p243 = scmp.le.s32.totalorder 1, %s18
      %p244 = scmp.lt.s32.totalorder %s18, 3
      %p245 = pnand %p243, %p244
      %p246 = pneg %p245
      // Predicated region
      $region29: #{tpu_custom_call.1} parent=5 // pred_check
        _
      $region30: #{tpu_custom_call.1} parent=5 // pred_check_branch
        %248 = sbr.rel (%p245) target = $region32
      $region31: #{tpu_custom_call.1} parent=5 // pred_region
        %s249 = ssub.s32 %s18, 1
        %s250 = sand.u32 %s61, 1
        %s251 = scalar_lea.sflag [#allocation7], %s250
        %s252 = sand.u32 %s61, 1
        %s253 = smul.addr %s252, 8
        %s254 = scalar_lea.vmem [#allocation6], %s253
        // Predicated region
        $region33: #{tpu_custom_call.1} parent=31 // pred_check
          %p255 = pneg %p74
        $region34: #{tpu_custom_call.1} parent=31 // pred_check_branch
          %257 = sbr.rel (%p255) target = $region36
        $region35: #{tpu_custom_call.1} parent=31 // pred_region
          %258 = dma.done %s251, 128
        $region36: #{tpu_custom_call.1} parent=31 // pred_fallthru
          _
        %s259 = sand.u32 %s23, 1
        %s260 = scalar_lea.sflag [#allocation10], %s259
        %s261 = sand.u32 %s91, 1
        %s262 = smul.addr %s261, 8
        %s263 = scalar_lea.vmem [#allocation9], %s262
        // Predicated region
        $region37: #{tpu_custom_call.1} parent=31 // pred_check
          %p264 = pneg %p104
        $region38: #{tpu_custom_call.1} parent=31 // pred_check_branch
          %266 = sbr.rel (%p264) target = $region40
        $region39: #{tpu_custom_call.1} parent=31 // pred_region
          %267 = dma.done %s260, 128
        $region40: #{tpu_custom_call.1} parent=31 // pred_fallthru
          _
        %s268 = sand.u32 %s23, 1
        %s269 = scalar_lea.sflag [#allocation10], %s268
        %s270 = sand.u32 %s121, 1
        %s271 = smul.addr %s270, 8
        %s272 = scalar_lea.vmem [#allocation11], %s271
        // Predicated region
        $region41: #{tpu_custom_call.1} parent=31 // pred_check
          %p273 = pneg %p134
        $region42: #{tpu_custom_call.1} parent=31 // pred_check_branch
          %275 = sbr.rel (%p273) target = $region44
        $region43: #{tpu_custom_call.1} parent=31 // pred_region
          %276 = dma.done %s269, 128
        $region44: #{tpu_custom_call.1} parent=31 // pred_fallthru
          _
        %s277 = sand.u32 %s61, 1
        %s278 = scalar_lea.sflag [#allocation7], %s277
        %s279 = sand.u32 %s61, 1
        %s280 = smul.addr %s279, 8
        %s281 = scalar_lea.vmem [#allocation6], %s280
        %p282 = pneg %p74
        %p283 = pneg %p71
        %s284 = sand.u32 %s23, 1
        %s285 = scalar_lea.sflag [#allocation10], %s284
        %s286 = sand.u32 %s91, 1
        %s287 = smul.addr %s286, 8
        %s288 = scalar_lea.vmem [#allocation9], %s287
        %p289 = pneg %p104
        %p290 = pneg %p101
        %s291 = sand.u32 %s23, 1
        %s292 = scalar_lea.sflag [#allocation10], %s291
        %s293 = sand.u32 %s121, 1
        %s294 = smul.addr %s293, 8
        %s295 = scalar_lea.vmem [#allocation11], %s294
        %p296 = pneg %p134
        %p297 = pneg %p131
        %p298 = pneg %p164
        %p299 = pneg %p161
        %s300 = sand.u32 %s151, 1
        %s301 = scalar_lea.sflag [#allocation8], %s300
        %s302 = sand.u32 %s151, 1
        %s303 = smul.addr %s302, 8
        %s304 = scalar_lea.vmem [#allocation12], %s303
        %p305 = scmp.eq.s32.totalorder %s32, 0
        // Predicated region
        $region45: #{tpu_custom_call.1} parent=31 // pred_check
          %p306 = pneg %p305
        $region46: #{tpu_custom_call.1} parent=31 // pred_check_branch
          %308 = sbr.rel (%p306) target = $region48
        $region47: #{tpu_custom_call.1} parent=31 // pred_region
          %vm309 = vcmask 7168
          %310 = vst.msk [vmem:[#allocation3] sm:$0xff] %vm309, -inf
          %311 = vst.msk [vmem:[#allocation3 + $0x8] sm:$0xff] %vm309, -inf
          %312 = vst.msk [vmem:[#allocation4] sm:$0xff] %vm309, 0.0
          %313 = vst.msk [vmem:[#allocation4 + $0x8] sm:$0xff] %vm309, 0.0
          %vm314 = vcmask 261120
          %315 = vst.msk [vmem:[#allocation5] sm:$0xff] %vm314, 0.0
          %316 = vst.msk [vmem:[#allocation5 + $0x8] sm:$0xff] %vm314, 0.0
          %v317 = vld [vmem:[%s254] sm:$0xff]
          %v318 = vmul.f32 %v317, 0.17677669
          %319 = vst.msk [vmem:[#allocation2] sm:$0xff] %vm314, %v318
          %v320 = vld [vmem:[%s254] sm:$0xff]
          %v321 = vmul.f32 %v320, 0.17677669
          %323 = vrot.lane.b32.xlu0 %v321, 96
          %v324 = vpop.permute.xlu0 %323
          %s326 = scalar_lea.vmem [#allocation2], 8
          %327 = vst.msk [vmem:[%s326] sm:$0xff] %vm314, %v324
        $region48: #{tpu_custom_call.1} parent=31 // pred_fallthru
          _
        %v328 = vld [vmem:[%s263] sm:$0xff]
        %v329 = vld [vmem:[%s272] sm:$0xff]
        %v330 = vld [vmem:[#allocation2] sm:$0xff]
        %vm331 = vcmask 261120
        %v333 = vsel %vm331, %v330, 0
        %v336 = vsel %vm331, %v328, 0
        %338 = vmatprep.subr.mxu0 0.0
        %339 = vmatpush1.xpose.msra.mxu0 %v336
        %340 = vmatprep.subr.mxu0 0.0
        %341 = vmatpush1.xpose.msra.mxu0 0.0
        %342 = vmatprep.subr.mxu0 0.0
        %343 = vmatpush1.xpose.msra.mxu0 0.0
        %344 = vmatprep.subr.mxu0 0.0
        %345 = vmatpush1.xpose.msra.mxu0 0.0
        %346 = vmatprep.subr.mxu0 0.0
        %347 = vmatpush1.xpose.msra.mxu0 0.0
        %348 = vmatprep.subr.mxu0 0.0
        %349 = vmatpush1.xpose.msra.mxu0 0.0
        %350 = vmatprep.subr.mxu0 0.0
        %351 = vmatpush1.xpose.msra.mxu0 0.0
        %352 = vmatprep.subr.mxu0 0.0
        %353 = vmatpush1.xpose.msra.mxu0 0.0
        %354 = vmatprep.subr.mxu0 0.0
        %355 = vmatpush1.xpose.msra.mxu0 0.0
        %356 = vmatprep.subr.mxu0 0.0
        %357 = vmatpush1.xpose.msra.mxu0 0.0
        %358 = vmatprep.subr.mxu0 0.0
        %359 = vmatpush1.xpose.msra.mxu0 0.0
        %360 = vmatprep.subr.mxu0 0.0
        %361 = vmatpush1.xpose.msra.mxu0 0.0
        %362 = vmatprep.subr.mxu0 0.0
        %363 = vmatpush1.xpose.msra.mxu0 0.0
        %364 = vmatprep.subr.mxu0 0.0
        %365 = vmatpush1.xpose.msra.mxu0 0.0
        %366 = vmatprep.subr.mxu0 0.0
        %367 = vmatpush1.xpose.msra.mxu0 0.0
        %368 = vmatprep.subr.mxu0 0.0
        %369 = vmatpush1.xpose.msra.mxu0 0.0
        %370 = vmatprep.subr.mxu0 0.0
        %371 = vmatpush1.xpose.msra.mxu0 0.0
        %372 = vmatprep.subr.mxu0 0.0
        %373 = vmatpush1.xpose.msra.mxu0 0.0
        %374 = vmatprep.subr.mxu0 0.0
        %375 = vmatpush1.xpose.msra.mxu0 0.0
        %376 = vmatprep.subr.mxu0 0.0
        %377 = vmatpush1.xpose.msra.mxu0 0.0
        %378 = vmatprep.subr.mxu0 0.0
        %379 = vmatpush1.xpose.msra.mxu0 0.0
        %380 = vmatprep.subr.mxu0 0.0
        %381 = vmatpush1.xpose.msra.mxu0 0.0
        %382 = vmatprep.subr.mxu0 0.0
        %383 = vmatpush1.xpose.msra.mxu0 0.0
        %384 = vmatprep.subr.mxu0 0.0
        %385 = vmatpush1.xpose.msra.mxu0 0.0
        %386 = vmatprep.subr.mxu0 0.0
        %387 = vmatpush1.xpose.msra.mxu0 0.0
        %388 = vmatprep.subr.mxu0 0.0
        %389 = vmatpush1.xpose.msra.mxu0 0.0
        %390 = vmatprep.subr.mxu0 0.0
        %391 = vmatpush1.xpose.msra.mxu0 0.0
        %392 = vmatprep.subr.mxu0 0.0
        %393 = vmatpush1.xpose.msra.mxu0 0.0
        %394 = vmatprep.subr.mxu0 0.0
        %395 = vmatpush1.xpose.msra.mxu0 0.0
        %396 = vmatprep.subr.mxu0 0.0
        %397 = vmatpush1.xpose.msra.mxu0 0.0
        %398 = vmatprep.subr.mxu0 0.0
        %399 = vmatpush1.xpose.msra.mxu0 0.0
        %400 = vmatprep.subr.mxu0 0.0
        %401 = vmatpush1.xpose.msra.mxu0 0.0
        %402 = vmatprep.mubr.f32.mxu0 0.0
        %403 = vmatmul.mubr.f32.gmra.mrb[0].mxu0 %v333
        %v404 = vpop.f32.mrb[0].mxu0
        %v405 = vadd.f32 0.0, %v404
        %v406 = vpop.f32.mrb[0].mxu0
        %407 = vdwg.mxu0
        %v408 = vld [vmem:[#allocation3] sm:$0xff]
        %vm409 = vcmask 64512
        %v410 = vsel %vm409, %v405, -inf
        %411 = vmax.xlane.f32.xlu0 %v410
        %v412 = vpop.xlane.xlu0 %411
        %v413 = vmax.f32 %v408, %v412
        %v414 = vsub.f32 %v408, %v413
        %v415 = vmul.f32 %v414, 1.442695
        %v416 = vpow.pop %v415
        %418 = vset.pattern.permute.xlu0 0
        %419 = vperm.xlu0 %418, %v413
        %v420 = vpop.permute.xlu0 %419
        %v422 = vsub.f32 %v405, %v420
        %v423 = vmul.f32 %v422, 1.442695
        %v424 = vpow.pop %v423
        %v425 = vld [vmem:[#allocation4] sm:$0xff]
        %v426 = vmul.f32 %v416, %v425
        %v427 = vsel %vm409, %v424, 0.0
        %428 = vadd.xlane.f32.xlu0 %v427
        %v429 = vpop.xlane.xlu0 %428
        %v430 = vadd.f32 %v426, %v429
        %vm431 = vcmask 7168
        %432 = vst.msk [vmem:[#allocation4] sm:$0xff] %vm431, %v430
        %v433 = vld [vmem:[#allocation5] sm:$0xff]
        %435 = vset.pattern.permute.xlu0 0
        %436 = vperm.xlu0 %435, %v416
        %v437 = vpop.permute.xlu0 %436
        %v439 = vmul.f32 %v437, %v433
        %v441 = vsel %vm409, %v424, 0
        %443 = vmatprep.subr.mxu0 0.0
        %444 = vmatpush1.msra.mxu0 %v329
        %445 = vmatprep.subr.mxu0 0.0
        %446 = vmatpush1.msra.mxu0 0.0
        %447 = vmatprep.subr.mxu0 0.0
        %448 = vmatpush1.msra.mxu0 0.0
        %449 = vmatprep.subr.mxu0 0.0
        %450 = vmatpush1.msra.mxu0 0.0
        %451 = vmatprep.subr.mxu0 0.0
        %452 = vmatpush1.msra.mxu0 0.0
        %453 = vmatprep.subr.mxu0 0.0
        %454 = vmatpush1.msra.mxu0 0.0
        %455 = vmatprep.subr.mxu0 0.0
        %456 = vmatpush1.msra.mxu0 0.0
        %457 = vmatprep.subr.mxu0 0.0
        %458 = vmatpush1.msra.mxu0 0.0
        %459 = vmatprep.subr.mxu0 0.0
        %460 = vmatpush1.msra.mxu0 0.0
        %461 = vmatprep.subr.mxu0 0.0
        %462 = vmatpush1.msra.mxu0 0.0
        %463 = vmatprep.subr.mxu0 0.0
        %464 = vmatpush1.msra.mxu0 0.0
        %465 = vmatprep.subr.mxu0 0.0
        %466 = vmatpush1.msra.mxu0 0.0
        %467 = vmatprep.subr.mxu0 0.0
        %468 = vmatpush1.msra.mxu0 0.0
        %469 = vmatprep.subr.mxu0 0.0
        %470 = vmatpush1.msra.mxu0 0.0
        %471 = vmatprep.subr.mxu0 0.0
        %472 = vmatpush1.msra.mxu0 0.0
        %473 = vmatprep.subr.mxu0 0.0
        %474 = vmatpush1.msra.mxu0 0.0
        %475 = vmatprep.subr.mxu0 0.0
        %476 = vmatpush1.msra.mxu0 0.0
        %477 = vmatprep.subr.mxu0 0.0
        %478 = vmatpush1.msra.mxu0 0.0
        %479 = vmatprep.subr.mxu0 0.0
        %480 = vmatpush1.msra.mxu0 0.0
        %481 = vmatprep.subr.mxu0 0.0
        %482 = vmatpush1.msra.mxu0 0.0
        %483 = vmatprep.subr.mxu0 0.0
        %484 = vmatpush1.msra.mxu0 0.0
        %485 = vmatprep.subr.mxu0 0.0
        %486 = vmatpush1.msra.mxu0 0.0
        %487 = vmatprep.subr.mxu0 0.0
        %488 = vmatpush1.msra.mxu0 0.0
        %489 = vmatprep.subr.mxu0 0.0
        %490 = vmatpush1.msra.mxu0 0.0
        %491 = vmatprep.subr.mxu0 0.0
        %492 = vmatpush1.msra.mxu0 0.0
        %493 = vmatprep.subr.mxu0 0.0
        %494 = vmatpush1.msra.mxu0 0.0
        %495 = vmatprep.subr.mxu0 0.0
        %496 = vmatpush1.msra.mxu0 0.0
        %497 = vmatprep.subr.mxu0 0.0
        %498 = vmatpush1.msra.mxu0 0.0
        %499 = vmatprep.subr.mxu0 0.0
        %500 = vmatpush1.msra.mxu0 0.0
        %501 = vmatprep.subr.mxu0 0.0
        %502 = vmatpush1.msra.mxu0 0.0
        %503 = vmatprep.subr.mxu0 0.0
        %504 = vmatpush1.msra.mxu0 0.0
        %505 = vmatprep.subr.mxu0 0.0
        %506 = vmatpush1.msra.mxu0 0.0
        %507 = vmatprep.mubr.f32.mxu0 0.0
        %508 = vmatmul.mubr.f32.gmra.mrb[0].mxu0 %v441
        %v509 = vpop.f32.mrb[0].mxu0
        %v510 = vadd.f32 0.0, %v509
        %v511 = vpop.f32.mrb[0].mxu0
        %512 = vdwg.mxu0
        %v513 = vadd.f32 %v439, %v510
        %514 = vst.msk [vmem:[#allocation5] sm:$0xff] %vm331, %v513
        %515 = vst.msk [vmem:[#allocation3] sm:$0xff] %vm431, %v413
        %v516 = vld [vmem:[%s263] sm:$0xff]
        %v517 = vld [vmem:[%s272] sm:$0xff]
        %s518 = scalar_lea.vmem [#allocation2], 8
        %v519 = vld [vmem:[%s518] sm:$0xff]
        %521 = vrot.lane.b32.xlu0 %v516, 96
        %v522 = vpop.permute.xlu0 %521
        %v524 = vsel %vm331, %v519, 0
        %v526 = vsel %vm331, %v522, 0
        %528 = vmatprep.subr.mxu0 0.0
        %529 = vmatpush1.xpose.msra.mxu0 %v526
        %530 = vmatprep.subr.mxu0 0.0
        %531 = vmatpush1.xpose.msra.mxu0 0.0
        %532 = vmatprep.subr.mxu0 0.0
        %533 = vmatpush1.xpose.msra.mxu0 0.0
        %534 = vmatprep.subr.mxu0 0.0
        %535 = vmatpush1.xpose.msra.mxu0 0.0
        %536 = vmatprep.subr.mxu0 0.0
        %537 = vmatpush1.xpose.msra.mxu0 0.0
        %538 = vmatprep.subr.mxu0 0.0
        %539 = vmatpush1.xpose.msra.mxu0 0.0
        %540 = vmatprep.subr.mxu0 0.0
        %541 = vmatpush1.xpose.msra.mxu0 0.0
        %542 = vmatprep.subr.mxu0 0.0
        %543 = vmatpush1.xpose.msra.mxu0 0.0
        %544 = vmatprep.subr.mxu0 0.0
        %545 = vmatpush1.xpose.msra.mxu0 0.0
        %546 = vmatprep.subr.mxu0 0.0
        %547 = vmatpush1.xpose.msra.mxu0 0.0
        %548 = vmatprep.subr.mxu0 0.0
        %549 = vmatpush1.xpose.msra.mxu0 0.0
        %550 = vmatprep.subr.mxu0 0.0
        %551 = vmatpush1.xpose.msra.mxu0 0.0
        %552 = vmatprep.subr.mxu0 0.0
        %553 = vmatpush1.xpose.msra.mxu0 0.0
        %554 = vmatprep.subr.mxu0 0.0
        %555 = vmatpush1.xpose.msra.mxu0 0.0
        %556 = vmatprep.subr.mxu0 0.0
        %557 = vmatpush1.xpose.msra.mxu0 0.0
        %558 = vmatprep.subr.mxu0 0.0
        %559 = vmatpush1.xpose.msra.mxu0 0.0
        %560 = vmatprep.subr.mxu0 0.0
        %561 = vmatpush1.xpose.msra.mxu0 0.0
        %562 = vmatprep.subr.mxu0 0.0
        %563 = vmatpush1.xpose.msra.mxu0 0.0
        %564 = vmatprep.subr.mxu0 0.0
        %565 = vmatpush1.xpose.msra.mxu0 0.0
        %566 = vmatprep.subr.mxu0 0.0
        %567 = vmatpush1.xpose.msra.mxu0 0.0
        %568 = vmatprep.subr.mxu0 0.0
        %569 = vmatpush1.xpose.msra.mxu0 0.0
        %570 = vmatprep.subr.mxu0 0.0
        %571 = vmatpush1.xpose.msra.mxu0 0.0
        %572 = vmatprep.subr.mxu0 0.0
        %573 = vmatpush1.xpose.msra.mxu0 0.0
        %574 = vmatprep.subr.mxu0 0.0
        %575 = vmatpush1.xpose.msra.mxu0 0.0
        %576 = vmatprep.subr.mxu0 0.0
        %577 = vmatpush1.xpose.msra.mxu0 0.0
        %578 = vmatprep.subr.mxu0 0.0
        %579 = vmatpush1.xpose.msra.mxu0 0.0
        %580 = vmatprep.subr.mxu0 0.0
        %581 = vmatpush1.xpose.msra.mxu0 0.0
        %582 = vmatprep.subr.mxu0 0.0
        %583 = vmatpush1.xpose.msra.mxu0 0.0
        %584 = vmatprep.subr.mxu0 0.0
        %585 = vmatpush1.xpose.msra.mxu0 0.0
        %586 = vmatprep.subr.mxu0 0.0
        %587 = vmatpush1.xpose.msra.mxu0 0.0
        %588 = vmatprep.subr.mxu0 0.0
        %589 = vmatpush1.xpose.msra.mxu0 0.0
        %590 = vmatprep.subr.mxu0 0.0
        %591 = vmatpush1.xpose.msra.mxu0 0.0
        %592 = vmatprep.mubr.f32.mxu0 0.0
        %593 = vmatmul.mubr.f32.gmra.mrb[0].mxu0 %v524
        %v594 = vpop.f32.mrb[0].mxu0
        %v595 = vadd.f32 0.0, %v594
        %v596 = vpop.f32.mrb[0].mxu0
        %597 = vdwg.mxu0
        %s598 = scalar_lea.vmem [#allocation3], 8
        %v599 = vld [vmem:[%s598] sm:$0xff]
        %v600 = vsel %vm409, %v595, -inf
        %601 = vmax.xlane.f32.xlu0 %v600
        %v602 = vpop.xlane.xlu0 %601
        %v603 = vmax.f32 %v599, %v602
        %v604 = vsub.f32 %v599, %v603
        %v605 = vmul.f32 %v604, 1.442695
        %v606 = vpow.pop %v605
        %608 = vset.pattern.permute.xlu0 0
        %609 = vperm.xlu0 %608, %v603
        %v610 = vpop.permute.xlu0 %609
        %v612 = vsub.f32 %v595, %v610
        %v613 = vmul.f32 %v612, 1.442695
        %v614 = vpow.pop %v613
        %s615 = scalar_lea.vmem [#allocation4], 8
        %v616 = vld [vmem:[%s615] sm:$0xff]
        %v617 = vmul.f32 %v606, %v616
        %v618 = vsel %vm409, %v614, 0.0
        %619 = vadd.xlane.f32.xlu0 %v618
        %v620 = vpop.xlane.xlu0 %619
        %v621 = vadd.f32 %v617, %v620
        %622 = vst.msk [vmem:[%s615] sm:$0xff] %vm431, %v621
        %s623 = scalar_lea.vmem [#allocation5], 8
        %v624 = vld [vmem:[%s623] sm:$0xff]
        %626 = vset.pattern.permute.xlu0 0
        %627 = vperm.xlu0 %626, %v606
        %v628 = vpop.permute.xlu0 %627
        %v630 = vmul.f32 %v628, %v624
        %632 = vrot.lane.b32.xlu0 %v517, 96
        %v633 = vpop.permute.xlu0 %632
        %v636 = vsel %vm409, %v614, 0
        %638 = vmatprep.subr.mxu0 0.0
        %639 = vmatpush1.msra.mxu0 %v633
        %640 = vmatprep.subr.mxu0 0.0
        %641 = vmatpush1.msra.mxu0 0.0
        %642 = vmatprep.subr.mxu0 0.0
        %643 = vmatpush1.msra.mxu0 0.0
        %644 = vmatprep.subr.mxu0 0.0
        %645 = vmatpush1.msra.mxu0 0.0
        %646 = vmatprep.subr.mxu0 0.0
        %647 = vmatpush1.msra.mxu0 0.0
        %648 = vmatprep.subr.mxu0 0.0
        %649 = vmatpush1.msra.mxu0 0.0
        %650 = vmatprep.subr.mxu0 0.0
        %651 = vmatpush1.msra.mxu0 0.0
        %652 = vmatprep.subr.mxu0 0.0
        %653 = vmatpush1.msra.mxu0 0.0
        %654 = vmatprep.subr.mxu0 0.0
        %655 = vmatpush1.msra.mxu0 0.0
        %656 = vmatprep.subr.mxu0 0.0
        %657 = vmatpush1.msra.mxu0 0.0
        %658 = vmatprep.subr.mxu0 0.0
        %659 = vmatpush1.msra.mxu0 0.0
        %660 = vmatprep.subr.mxu0 0.0
        %661 = vmatpush1.msra.mxu0 0.0
        %662 = vmatprep.subr.mxu0 0.0
        %663 = vmatpush1.msra.mxu0 0.0
        %664 = vmatprep.subr.mxu0 0.0
        %665 = vmatpush1.msra.mxu0 0.0
        %666 = vmatprep.subr.mxu0 0.0
        %667 = vmatpush1.msra.mxu0 0.0
        %668 = vmatprep.subr.mxu0 0.0
        %669 = vmatpush1.msra.mxu0 0.0
        %670 = vmatprep.subr.mxu0 0.0
        %671 = vmatpush1.msra.mxu0 0.0
        %672 = vmatprep.subr.mxu0 0.0
        %673 = vmatpush1.msra.mxu0 0.0
        %674 = vmatprep.subr.mxu0 0.0
        %675 = vmatpush1.msra.mxu0 0.0
        %676 = vmatprep.subr.mxu0 0.0
        %677 = vmatpush1.msra.mxu0 0.0
        %678 = vmatprep.subr.mxu0 0.0
        %679 = vmatpush1.msra.mxu0 0.0
        %680 = vmatprep.subr.mxu0 0.0
        %681 = vmatpush1.msra.mxu0 0.0
        %682 = vmatprep.subr.mxu0 0.0
        %683 = vmatpush1.msra.mxu0 0.0
        %684 = vmatprep.subr.mxu0 0.0
        %685 = vmatpush1.msra.mxu0 0.0
        %686 = vmatprep.subr.mxu0 0.0
        %687 = vmatpush1.msra.mxu0 0.0
        %688 = vmatprep.subr.mxu0 0.0
        %689 = vmatpush1.msra.mxu0 0.0
        %690 = vmatprep.subr.mxu0 0.0
        %691 = vmatpush1.msra.mxu0 0.0
        %692 = vmatprep.subr.mxu0 0.0
        %693 = vmatpush1.msra.mxu0 0.0
        %694 = vmatprep.subr.mxu0 0.0
        %695 = vmatpush1.msra.mxu0 0.0
        %696 = vmatprep.subr.mxu0 0.0
        %697 = vmatpush1.msra.mxu0 0.0
        %698 = vmatprep.subr.mxu0 0.0
        %699 = vmatpush1.msra.mxu0 0.0
        %700 = vmatprep.subr.mxu0 0.0
        %701 = vmatpush1.msra.mxu0 0.0
        %702 = vmatprep.mubr.f32.mxu0 0.0
        %703 = vmatmul.mubr.f32.gmra.mrb[0].mxu0 %v636
        %v704 = vpop.f32.mrb[0].mxu0
        %v705 = vadd.f32 0.0, %v704
        %v706 = vpop.f32.mrb[0].mxu0
        %707 = vdwg.mxu0
        %v708 = vadd.f32 %v630, %v705
        %709 = vst.msk [vmem:[%s623] sm:$0xff] %vm331, %v708
        %710 = vst.msk [vmem:[%s598] sm:$0xff] %vm431, %v603
        // Predicated region
        $region49: #{tpu_custom_call.1} parent=31 // pred_check
          %p711 = pneg %p305
        $region50: #{tpu_custom_call.1} parent=31 // pred_check_branch
          %713 = sbr.rel (%p711) target = $region52
        $region51: #{tpu_custom_call.1} parent=31 // pred_region
          %v714 = vld [vmem:[#allocation4] sm:$0xff]
          %v715 = vrcp.pop %v714
          %v716 = vmul.f32 1.0, %v715
          %v717 = vld [vmem:[#allocation5] sm:$0xff]
          %719 = vset.pattern.permute.xlu0 0
          %720 = vperm.xlu0 %719, %v716
          %v721 = vpop.permute.xlu0 %720
          %v723 = vmul.f32 %v717, %v721
          %724 = vst.msk [vmem:[%s304] sm:$0xff] %vm331, %v723
          %v725 = vld [vmem:[%s615] sm:$0xff]
          %v726 = vrcp.pop %v725
          %v727 = vmul.f32 1.0, %v726
          %v728 = vld [vmem:[%s623] sm:$0xff]
          %730 = vset.pattern.permute.xlu0 0
          %731 = vperm.xlu0 %730, %v727
          %v732 = vpop.permute.xlu0 %731
          %v734 = vmul.f32 %v728, %v732
          %736 = vrot.lane.b32.xlu0 %v734, 32
          %v737 = vpop.permute.xlu0 %736
          %vm739 = vcmask 523520
          %740 = vst.msk [vmem:[%s304] sm:$0xff] %vm739, %v737
        $region52: #{tpu_custom_call.1} parent=31 // pred_fallthru
          _
        %s741 = sand.u32 %s151, 1
        %s742 = scalar_lea.sflag [#allocation8], %s741
        %s743 = sand.u32 %s151, 1
        %s744 = smul.addr %s743, 8
        %s745 = scalar_lea.vmem [#allocation12], %s744
        // Predicated region
        $region53: #{tpu_custom_call.1} parent=31 // pred_check
          %p746 = pneg %p161
        $region54: #{tpu_custom_call.1} parent=31 // pred_check_branch
          %748 = sbr.rel (%p746) target = $region56
        $region55: #{tpu_custom_call.1} parent=31 // pred_region
          %s750 = ssub.s32 128, 128
          %751 = vsyncadd %s742, %s750
          %s752 = sadd.s32 %s30, %s31
          %s753 = sadd.s32 %s752, %s29
          %s754 = smul.addr %s753, 128
          %s755 = scalar_lea.hbm %s3, %s754
          %s757 = sshll.u32 %s745, 4
          %s758 = int_to_ptr.vmem [resolvable:$true] %s757
          %760 = dma.vmem_to_hbm [thread:$0]  %s758, 128, %s755, %s742
        $region56: #{tpu_custom_call.1} parent=31 // pred_fallthru
          _
      $region32: #{tpu_custom_call.1} parent=5 // pred_fallthru
        _
      %p761 = scmp.le.s32.totalorder 2, %s18
      // Predicated region
      $region57: #{tpu_custom_call.1} parent=5 // pred_check
        %p762 = pneg %p761
      $region58: #{tpu_custom_call.1} parent=5 // pred_check_branch
        %764 = sbr.rel (%p762) target = $region60
      $region59: #{tpu_custom_call.1} parent=5 // pred_region
        %s765 = ssub.s32 %s18, 2
        // Predicated region
        $region61: #{tpu_custom_call.1} parent=59 // pred_check
          %p766 = pneg %p167
        $region62: #{tpu_custom_call.1} parent=59 // pred_check_branch
          %768 = sbr.rel (%p766) target = $region64
        $region63: #{tpu_custom_call.1} parent=59 // pred_region
          %s769 = sand.u32 %s152, 1
          %s770 = scalar_lea.sflag [#allocation8], %s769
          %s771 = sand.u32 %s152, 1
          %s772 = smul.addr %s771, 8
          %s773 = scalar_lea.vmem [#allocation12], %s772
          %774 = dma.done %s770, 128
        $region64: #{tpu_custom_call.1} parent=59 // pred_fallthru
          _
      $region60: #{tpu_custom_call.1} parent=5 // pred_fallthru
        _
    $region6: #{tpu_custom_call.1} parent=1 // loop_footer
      %s22 = sadd.s32 1, %s18
    $region7: #{tpu_custom_call.1} parent=1 // loop_footer_branch
      %17 = sbr.rel target = $region3
    $region8: #{tpu_custom_call.1} parent=1 // loop_exit
      _
    %775 = vsyncpa [#allocation7], 1
    %s776 = scalar_lea.sflag [#allocation7], 1
    %777 = vsyncpa %s776, 1
    %778 = vsyncpa [#allocation10], 1
    %s779 = scalar_lea.sflag [#allocation10], 1
    %780 = vsyncpa %s779, 1
    %781 = vsyncpa [#allocation8], 1
    %s782 = scalar_lea.sflag [#allocation8], 1
    %783 = vsyncpa %s782, 1

</llo_original>
